<compile_context>
chip_gen: v7x
topology: tpu7x:2x2x1
jax: 0.10.0
libtpu: 0.0.40
codegen_flags: <defaults>
</compile_context>

<pallas_src>
import functools

import jax
import jax.numpy as jnp
from jax.experimental import pallas as pl
from jax.experimental.pallas import tpu as pltpu


def _reflow_loss_kernel(*refs, loss_type, has_mask):
    # refs = (vp, vg, [mask], out, acc) depending on static flags.
    idx = 0
    vp_ref = refs[idx]; idx += 1
    vg_ref = refs[idx]; idx += 1
    if has_mask:
        m_ref = refs[idx]; idx += 1
    out_ref = refs[idx]; idx += 1
    acc_ref = refs[idx]

    jt = pl.program_id(1)

    # zero the per-batch tile accumulator at the first T-tile of each batch
    @pl.when(jt == 0)
    def _():
        acc_ref[...] = jnp.zeros_like(acc_ref)

    # pure VPU body: cast, one subtract, (one fused mask multiply), loss, add
    diff = vp_ref[...].astype(jnp.float32) - vg_ref[...].astype(jnp.float32)
    if has_mask:
        diff = diff * m_ref[...].astype(jnp.float32)
    if loss_type == "l1":
        elem = jnp.abs(diff)
    elif loss_type == "l2":
        elem = diff * diff
    else:
        raise NotImplementedError(loss_type)
    acc_ref[...] += elem

    # single cross-lane reduction per batch, once, at the last T-tile
    @pl.when(jt == pl.num_programs(1) - 1)
    def _():
        out_ref[...] = jnp.full((1, 8, 128), jnp.sum(acc_ref[...]),
                                dtype=jnp.float32)


def _log_norm_weights(t):
    eps = jnp.float32(1e-7)
    tc = jnp.clip(t.astype(jnp.float32), eps, jnp.float32(1.0) - eps)
    return (jnp.float32(0.398942) / tc / (jnp.float32(1.0) - tc)
            * jnp.exp(jnp.float32(-0.5) * jnp.log(tc / (jnp.float32(1.0) - tc)) ** 2)
            + eps)


def _pick_t_tile(T, per_col_bytes):
    """Largest multiple-of-128 T-tile dividing T whose double-buffered VMEM
    footprint stays under ~12 MiB (safe for v5e's 16 MiB scoped default)."""
    if T % 128 != 0:
        return T  # full-extent block is always legal
    budget = 12 << 20
    max_tt = max(128, (budget // max(per_col_bytes, 1)) // 128 * 128)
    if T <= max_tt:
        return T
    best = 128
    tt = 256
    while tt <= max_tt:
        if T % tt == 0:
            best = tt
        tt += 128
    return best


def rectified_flow_loss(v_pred, v_gt, t, non_padding=None,
                        loss_type="l2", log_norm=True):
    """Pallas equivalent of RectifiedFlowLoss(loss_type, log_norm).forward(...).

    v_pred, v_gt: [B, 1, M, T]; t: [B]; non_padding: [B, T, M] or None.
    Returns a float32 scalar.
    """
    B, C, M, T = v_pred.shape
    assert C == 1, "channel dim must be 1 as in the reference module"

    vp = v_pred.reshape(B, M, T)          # no dtype cast: stream native dtype
    vg = v_gt.reshape(B, M, T)

    has_mask = non_padding is not None
    stream_bytes = jnp.dtype(vp.dtype).itemsize + jnp.dtype(vg.dtype).itemsize
    mask = None
    if has_mask:
        m = non_padding
        if m.dtype == jnp.bool_:
            m = m.astype(jnp.int8)        # 1 B/elem of HBM traffic
        # TODO(synk): the [B,T,M]->[B,M,T] transpose stays as an XLA op on the
        # narrow dtype; fusing it into the kernel would force a per-tile XLU
        # transpose (lane-sparse for small M), so it is cheaper outside.
        mask = jnp.transpose(m, (0, 2, 1))  # [B, M, T]
        stream_bytes += jnp.dtype(mask.dtype).itemsize

    # double-buffered input streams + f32 accumulator, per (M x 1) column
    per_col_bytes = M * (2 * stream_bytes + 4)
    TT = _pick_t_tile(T, per_col_bytes)
    NT = T // TT

    data_spec = pl.BlockSpec((1, M, TT), lambda b, jt: (b, 0, jt))
    inputs = [vp, vg]
    in_specs = [data_spec, data_spec]
    if has_mask:
        inputs.append(mask)
        in_specs.append(pl.BlockSpec((1, M, TT), lambda b, jt: (b, 0, jt)))

    kernel = functools.partial(
        _reflow_loss_kernel, loss_type=loss_type, has_mask=has_mask)

    partials = pl.pallas_call(
        kernel,
        out_shape=jax.ShapeDtypeStruct((B, 8, 128), jnp.float32),
        grid=(B, NT),
        in_specs=in_specs,
        out_specs=pl.BlockSpec((1, 8, 128), lambda b, jt: (b, 0, 0)),
        scratch_shapes=[pltpu.VMEM((1, M, TT), jnp.float32)],
        compiler_params=pltpu.CompilerParams(
            # batch axis can shard across both TCs on v7x; T axis is the
            # sequential reduction and must come last
            dimension_semantics=("parallel", "arbitrary"),
        ),
    )(*inputs)

    per_batch = partials[:, 0, 0]                      # [B] per-batch loss sums
    if log_norm:
        per_batch = per_batch * _log_norm_weights(t)   # O(B), outside the kernel
    total_elems = B * C * M * T
    return jnp.sum(per_batch) * (1.0 / float(total_elems))


def _reference(v_pred, v_gt, t, non_padding=None, loss_type="l2", log_norm=True):
    """Pure-JAX reference mirroring the PyTorch module (compute in f32)."""
    v_pred = v_pred.astype(jnp.float32)
    v_gt = v_gt.astype(jnp.float32)
    if non_padding is not None:
        m = jnp.transpose(non_padding.astype(jnp.float32), (0, 2, 1))[:, None, :, :]
        v_pred = v_pred * m
        v_gt = v_gt * m
    diff = v_pred - v_gt
    loss = jnp.abs(diff) if loss_type == "l1" else diff * diff
    if log_norm:
        w = _log_norm_weights(t)
        loss = w[:, None, None, None] * loss
    return jnp.mean(loss)


if __name__ == "__main__":
    key = jax.random.PRNGKey(0)
    B, C, M, T = 2, 1, 16, 128

    k1, k2, k3, k4 = jax.random.split(key, 4)
    v_pred = jax.random.normal(k1, (B, C, M, T), dtype=jnp.float32)
    v_gt = jax.random.normal(k2, (B, C, M, T), dtype=jnp.float32)
    t = jax.random.uniform(k3, (B,), dtype=jnp.float32)
    non_padding_f32 = (jax.random.uniform(k4, (B, T, M)) > 0.2).astype(jnp.float32)
    non_padding_bool = non_padding_f32 > 0.5

    # 1) f32 inputs, f32 mask, l2, log-norm (main path)
    out = rectified_flow_loss(v_pred, v_gt, t, non_padding_f32,
                              loss_type="l2", log_norm=True)
    out = jax.block_until_ready(out)
    ref = _reference(v_pred, v_gt, t, non_padding_f32,
                     loss_type="l2", log_norm=True)
    assert jnp.allclose(out, ref, rtol=1e-4, atol=1e-6), ("l2", out, ref)

    # 2) narrow-dtype path: bf16 activations + bool(->int8) mask, l1, log-norm
    vp_bf = v_pred.astype(jnp.bfloat16)
    vg_bf = v_gt.astype(jnp.bfloat16)
    out = rectified_flow_loss(vp_bf, vg_bf, t, non_padding_bool,
                              loss_type="l1", log_norm=True)
    out = jax.block_until_ready(out)
    ref = _reference(vp_bf, vg_bf, t, non_padding_bool,
                     loss_type="l1", log_norm=True)
    assert jnp.allclose(out, ref, rtol=1e-3, atol=1e-5), ("l1-bf16", out, ref)

    # 3) mask-free / weight-free kernel variant
    out = rectified_flow_loss(v_pred, v_gt, t, None, loss_type="l2", log_norm=False)
    out = jax.block_until_ready(out)
    ref = _reference(v_pred, v_gt, t, None, loss_type="l2", log_norm=False)
    assert jnp.allclose(out, ref, rtol=1e-4, atol=1e-6), ("l2-nomask", out, ref)

    print("KERNEL_OK")
</pallas_src>

<mosaic_0001>
module attributes {stable_mosaic.version = 11 : i64} {
  func.func @_reflow_loss_kernel(%arg0: i32, %arg1: i32, %arg2: memref<1x16x128xf32, #tpu.memory_space<vmem>>, %arg3: memref<1x16x128xf32, #tpu.memory_space<vmem>>, %arg4: memref<1x16x128xf32, #tpu.memory_space<vmem>>, %arg5: memref<1x8x128xf32, #tpu.memory_space<vmem>>, %arg6: memref<1x16x128xf32, #tpu.memory_space<vmem>>) attributes {dimension_semantics = [#tpu.dimension_semantics<parallel>, #tpu.dimension_semantics<arbitrary>], iteration_bounds = array<i64: 2, 1>, scalar_prefetch = 0 : i64, scratch_operands = 1 : i64, tpu.core_type = #tpu.core_type<tc>, window_params = [{transform_indices = @transform_0, window_bounds = array<i64: 1, 16, 128>}, {transform_indices = @transform_1, window_bounds = array<i64: 1, 16, 128>}, {transform_indices = @transform_2, window_bounds = array<i64: 1, 16, 128>}, {transform_indices = @transform_3, window_bounds = array<i64: 1, 8, 128>}]} {
    %c0_i32 = arith.constant 0 : i32
    %0 = arith.cmpi eq, %arg1, %c0_i32 : i32
    %1 = arith.extui %0 : i1 to i32
    %c0_i32_0 = arith.constant 0 : i32
    %2 = arith.cmpi ne, %1, %c0_i32_0 : i32
    scf.if %2 {
      %cst = arith.constant 0.000000e+00 : f32
      %15 = vector.broadcast %cst : f32 to vector<1x16x128xf32>
      %c0_17 = arith.constant 0 : index
      %c0_18 = arith.constant 0 : index
      %c0_19 = arith.constant 0 : index
      %16 = vector.load %arg6[%c0_17, %c0_18, %c0_19] : memref<1x16x128xf32, #tpu.memory_space<vmem>>, vector<1x16x128xf32>
      tpu.vector_store %arg6[%c0_17, %c0_18, %c0_19], %15 {strides = array<i32>} : memref<1x16x128xf32, #tpu.memory_space<vmem>>, vector<1x16x128xf32>,
    } else {
    }
    %c0 = arith.constant 0 : index
    %c0_1 = arith.constant 0 : index
    %c0_2 = arith.constant 0 : index
    %3 = vector.load %arg2[%c0, %c0_1, %c0_2] : memref<1x16x128xf32, #tpu.memory_space<vmem>>, vector<1x16x128xf32>
    %c0_3 = arith.constant 0 : index
    %c0_4 = arith.constant 0 : index
    %c0_5 = arith.constant 0 : index
    %4 = vector.load %arg3[%c0_3, %c0_4, %c0_5] : memref<1x16x128xf32, #tpu.memory_space<vmem>>, vector<1x16x128xf32>
    %5 = arith.subf %3, %4 : vector<1x16x128xf32>
    %c0_6 = arith.constant 0 : index
    %c0_7 = arith.constant 0 : index
    %c0_8 = arith.constant 0 : index
    %6 = vector.load %arg4[%c0_6, %c0_7, %c0_8] : memref<1x16x128xf32, #tpu.memory_space<vmem>>, vector<1x16x128xf32>
    %7 = arith.mulf %5, %6 : vector<1x16x128xf32>
    %8 = arith.mulf %7, %7 : vector<1x16x128xf32>
    %c0_9 = arith.constant 0 : index
    %c0_10 = arith.constant 0 : index
    %c0_11 = arith.constant 0 : index
    %9 = vector.load %arg6[%c0_9, %c0_10, %c0_11] : memref<1x16x128xf32, #tpu.memory_space<vmem>>, vector<1x16x128xf32>
    %10 = arith.addf %9, %8 : vector<1x16x128xf32>
    %c0_12 = arith.constant 0 : index
    %c0_13 = arith.constant 0 : index
    %c0_14 = arith.constant 0 : index
    %11 = vector.load %arg6[%c0_12, %c0_13, %c0_14] : memref<1x16x128xf32, #tpu.memory_space<vmem>>, vector<1x16x128xf32>
    tpu.vector_store %arg6[%c0_12, %c0_13, %c0_14], %10 {strides = array<i32>} : memref<1x16x128xf32, #tpu.memory_space<vmem>>, vector<1x16x128xf32>,
    %c0_i32_15 = arith.constant 0 : i32
    %12 = arith.cmpi eq, %arg1, %c0_i32_15 : i32
    %13 = arith.extui %12 : i1 to i32
    %c0_i32_16 = arith.constant 0 : i32
    %14 = arith.cmpi ne, %13, %c0_i32_16 : i32
    scf.if %14 {
      %c0_17 = arith.constant 0 : index
      %c0_18 = arith.constant 0 : index
      %c0_19 = arith.constant 0 : index
      %15 = vector.load %arg6[%c0_17, %c0_18, %c0_19] : memref<1x16x128xf32, #tpu.memory_space<vmem>>, vector<1x16x128xf32>
      %16 = vector.shape_cast %15 : vector<1x16x128xf32> to vector<1x1x16x128xf32>
      %cst = arith.constant dense<0.000000e+00> : vector<1xf32>
      %17 = vector.multi_reduction <add>, %16, %cst [1, 2, 3] : vector<1x1x16x128xf32> to vector<1xf32>
      %18 = vector.shape_cast %17 : vector<1xf32> to vector<1x1x1x1xf32>
      %19 = vector.extract %18[0, 0, 0, 0] : f32 from vector<1x1x1x1xf32>
      %20 = vector.broadcast %19 : f32 to vector<1x8x128xf32>
      %c0_20 = arith.constant 0 : index
      %c0_21 = arith.constant 0 : index
      %c0_22 = arith.constant 0 : index
      %21 = vector.load %arg5[%c0_20, %c0_21, %c0_22] : memref<1x8x128xf32, #tpu.memory_space<vmem>>, vector<1x8x128xf32>
      tpu.vector_store %arg5[%c0_20, %c0_21, %c0_22], %20 {strides = array<i32>} : memref<1x8x128xf32, #tpu.memory_space<vmem>>, vector<1x8x128xf32>,
    } else {
    }
    return
  }
  func.func @transform_0(%arg0: i32, %arg1: i32) -> (i32, i32, i32) {
    %c0_i32 = arith.constant 0 : i32
    %c0_i32_0 = arith.constant 0 : i32
    return %arg0, %c0_i32, %arg1 : i32, i32, i32
  }
  func.func @transform_1(%arg0: i32, %arg1: i32) -> (i32, i32, i32) {
    %c0_i32 = arith.constant 0 : i32
    %c0_i32_0 = arith.constant 0 : i32
    return %arg0, %c0_i32, %arg1 : i32, i32, i32
  }
  func.func @transform_2(%arg0: i32, %arg1: i32) -> (i32, i32, i32) {
    %c0_i32 = arith.constant 0 : i32
    %c0_i32_0 = arith.constant 0 : i32
    return %arg0, %c0_i32, %arg1 : i32, i32, i32
  }
  func.func @transform_3(%arg0: i32, %arg1: i32) -> (i32, i32, i32) {
    %c0_i32 = arith.constant 0 : i32
    %c0_i32_0 = arith.constant 0 : i32
    %c0_i32_1 = arith.constant 0 : i32
    return %arg0, %c0_i32, %c0_i32_0 : i32, i32, i32
  }
}

</mosaic_0001>

<llo_original>
// kernel: tpu_custom_call.1
$region0: #{tpu_custom_call.1}
  #allocation0 [shape = 'u32[]', space=smem, size = 0x4, offset = 0x4, fixed_abs, tag = 'smem constant byte address 0x4 - core index']
  #allocation1 [shape = 'u32[144,128]{1,0:T(1,128)}', space=vmem, size = 0x12000, scoped, tag = 'internal scratch']
  #allocation2 [shape = 'f32[1,16,128]{2,1,0:T(8,128)}', space=vmem, size = 0x2000, scoped, tag = 'scratch operand']
  %s0 = inlined_call_operand.hbm [shape: f32[2,16,128], index: 0, kind: input, shape index: {}]
  %s1 = inlined_call_operand.hbm [shape: f32[2,16,128], index: 1, kind: input, shape index: {}]
  %s2 = inlined_call_operand.hbm [shape: f32[2,16,128], index: 2, kind: input, shape index: {}]
  %s3 = inlined_call_operand.hbm [shape: f32[2,8,128], index: 3, kind: output, shape index: {}]
  %s4 = sld [smem:[#allocation0]]
  $region65: #{tpu_custom_call.1} parent=0
    _
  %s6 = ssub.s32 1, %s4
  %s7 = scalar_select 0, %s6, %s4
  $region1: #{tpu_custom_call.1} parent=0
    #allocation3 [shape = 'u8[16384]{0}', space=vmem, size = 0x4000, scoped, tag = 'input window, operand 0']
    #allocation4 [shape = 's32[2]{0}', space=sflag, size = 0x8, scoped, tag = 'scoped memory for tpu_custom_call.1']
    #allocation5 [shape = 's32[2]{0}', space=sflag, size = 0x8, scoped, tag = 'scoped memory for tpu_custom_call.1']
    #allocation6 [shape = 'u8[16384]{0}', space=vmem, size = 0x4000, scoped, tag = 'input window, operand 1']
    #allocation7 [shape = 's32[2]{0}', space=sflag, size = 0x8, scoped, tag = 'scoped memory for tpu_custom_call.1']
    #allocation8 [shape = 'u8[16384]{0}', space=vmem, size = 0x4000, scoped, tag = 'input window, operand 2']
    #allocation9 [shape = 'u8[8192]{0}', space=vmem, size = 0x2000, scoped, tag = 'output window, operand 0']
    %8 = vsyncpa [#allocation4], 0
    %s9 = scalar_lea.sflag [#allocation4], 1
    %10 = vsyncpa %s9, 0
    %11 = vsyncpa [#allocation7], 0
    %s12 = scalar_lea.sflag [#allocation7], 1
    %13 = vsyncpa %s12, 0
    %14 = vsyncpa [#allocation5], 0
    %s15 = scalar_lea.sflag [#allocation5], 1
    %16 = vsyncpa %s15, 0
    loop: start=0, step=1, limit=4
    $region2: #{tpu_custom_call.1} parent=1 // loop_pre_header
      _
    $region3: #{tpu_custom_call.1} parent=1 // loop_header
      %s18 = sphi 0, %s22
      %p19 = scmp.ge.s32.totalorder %s18, 4
      %s25 = sphi 0, %s37
      %s26 = sphi 0, %s33
      %s27 = sphi 0, %s25
      %s28 = sphi 0, %s26
      %s29 = sphi 0, %s27
      %s30 = sphi 0, %s28
      %s42 = sphi 0, %s44
      %s45 = sphi 0, %s42
      %s46 = sphi 0, %s45
      %s62 = sphi 0, %s46
      %s70 = sphi 0, %s72
      %s73 = sphi 0, %s70
      %s74 = sphi 0, %s73
      %s90 = sphi 0, %s74
      %s98 = sphi 0, %s100
      %s101 = sphi 0, %s98
      %s102 = sphi 0, %s101
      %s118 = sphi 0, %s102
      %s124 = sphi 0, %s126
      %s127 = sphi 0, %s124
      %s128 = sphi 0, %s127
      %s144 = sphi 0, %s128
    $region4: #{tpu_custom_call.1} parent=1 // loop_header_branch
      %21 = sbr.rel (%p19) target = $region8
    $region5: #{tpu_custom_call.1} parent=1 // loop_body
      %s23 = ssub.s32 %s18, 1
      %s24 = ssub.s32 %s18, 2
      %s31 = sadd.s32 1, %s26
      %p32 = scmp.ge.s32.totalorder %s31, 1
      %s33 = scalar_select %p32, 0, %s31
      %s34 = sadd.s32 1, %s25
      %s35 = scalar_select %p32, %s34, %s25
      %p36 = scmp.ge.s32.totalorder %s35, 2
      %s37 = scalar_select %p36, 0, %s35
      %s38 = ssub.s32 %s25, %s37
      %s39 = ssub.s32 %s26, %s33
      %s40 = sor.u32 %s38, %s39
      %p41 = scmp.eq.s32.totalorder %s40, 0
      %s43 = sadd.s32 %s42, 1
      %s44 = scalar_select %p41, %s42, %s43
      %p47 = pneg %p41
      %p48 = scmp.eq.s32.totalorder %s18, 1
      %p49 = por %p47, %p48
      %p50 = scmp.ne.s32.totalorder %s42, %s45
      %p51 = scmp.eq.s32.totalorder %s18, 0
      %p52 = por %p50, %p51
      %p53 = scmp.ne.s32.totalorder %s42, %s45
      %p54 = scmp.eq.s32.totalorder %s23, 1
      %p55 = por %p53, %p54
      %p56 = scmp.ne.s32.totalorder %s45, %s46
      %p57 = scmp.eq.s32.totalorder %s23, 0
      %p58 = por %p56, %p57
      %p59 = scmp.ne.s32.totalorder %s45, %s46
      %p60 = scmp.eq.s32.totalorder %s24, 1
      %p61 = por %p59, %p60
      %p63 = scmp.ne.s32.totalorder %s46, %s62
      %p64 = scmp.eq.s32.totalorder %s24, 0
      %p65 = por %p63, %p64
      %s66 = ssub.s32 %s25, %s37
      %s67 = ssub.s32 %s26, %s33
      %s68 = sor.u32 %s66, %s67
      %p69 = scmp.eq.s32.totalorder %s68, 0
      %s71 = sadd.s32 %s70, 1
      %s72 = scalar_select %p69, %s70, %s71
      %p75 = pneg %p69
      %p76 = scmp.eq.s32.totalorder %s18, 1
      %p77 = por %p75, %p76
      %p78 = scmp.ne.s32.totalorder %s70, %s73
      %p79 = scmp.eq.s32.totalorder %s18, 0
      %p80 = por %p78, %p79
      %p81 = scmp.ne.s32.totalorder %s70, %s73
      %p82 = scmp.eq.s32.totalorder %s23, 1
      %p83 = por %p81, %p82
      %p84 = scmp.ne.s32.totalorder %s73, %s74
      %p85 = scmp.eq.s32.totalorder %s23, 0
      %p86 = por %p84, %p85
      %p87 = scmp.ne.s32.totalorder %s73, %s74
      %p88 = scmp.eq.s32.totalorder %s24, 1
      %p89 = por %p87, %p88
      %p91 = scmp.ne.s32.totalorder %s74, %s90
      %p92 = scmp.eq.s32.totalorder %s24, 0
      %p93 = por %p91, %p92
      %s94 = ssub.s32 %s25, %s37
      %s95 = ssub.s32 %s26, %s33
      %s96 = sor.u32 %s94, %s95
      %p97 = scmp.eq.s32.totalorder %s96, 0
      %s99 = sadd.s32 %s98, 1
      %s100 = scalar_select %p97, %s98, %s99
      %p103 = pneg %p97
      %p104 = scmp.eq.s32.totalorder %s18, 1
      %p105 = por %p103, %p104
      %p106 = scmp.ne.s32.totalorder %s98, %s101
      %p107 = scmp.eq.s32.totalorder %s18, 0
      %p108 = por %p106, %p107
      %p109 = scmp.ne.s32.totalorder %s98, %s101
      %p110 = scmp.eq.s32.totalorder %s23, 1
      %p111 = por %p109, %p110
      %p112 = scmp.ne.s32.totalorder %s101, %s102
      %p113 = scmp.eq.s32.totalorder %s23, 0
      %p114 = por %p112, %p113
      %p115 = scmp.ne.s32.totalorder %s101, %s102
      %p116 = scmp.eq.s32.totalorder %s24, 1
      %p117 = por %p115, %p116
      %p119 = scmp.ne.s32.totalorder %s102, %s118
      %p120 = scmp.eq.s32.totalorder %s24, 0
      %p121 = por %p119, %p120
      %s122 = ssub.s32 %s25, %s37
      %p123 = scmp.eq.s32.totalorder %s122, 0
      %s125 = sadd.s32 %s124, 1
      %s126 = scalar_select %p123, %s124, %s125
      %p129 = pneg %p123
      %p130 = scmp.eq.s32.totalorder %s18, 1
      %p131 = por %p129, %p130
      %p132 = scmp.ne.s32.totalorder %s124, %s127
      %p133 = scmp.eq.s32.totalorder %s18, 0
      %p134 = por %p132, %p133
      %p135 = scmp.ne.s32.totalorder %s124, %s127
      %p136 = scmp.eq.s32.totalorder %s23, 1
      %p137 = por %p135, %p136
      %p138 = scmp.ne.s32.totalorder %s127, %s128
      %p139 = scmp.eq.s32.totalorder %s23, 0
      %p140 = por %p138, %p139
      %p141 = scmp.ne.s32.totalorder %s127, %s128
      %p142 = scmp.eq.s32.totalorder %s24, 1
      %p143 = por %p141, %p142
      %p145 = scmp.ne.s32.totalorder %s128, %s144
      %p146 = scmp.eq.s32.totalorder %s24, 0
      %p147 = por %p145, %p146
      %p148 = scmp.le.s32.totalorder 1, %s18
      %p149 = scmp.lt.s32.totalorder %s18, 3
      %p150 = pnand %p148, %p149
      %p151 = pneg %p150
      // Predicated region
      $region9: #{tpu_custom_call.1} parent=5 // pred_check
        _
      $region10: #{tpu_custom_call.1} parent=5 // pred_check_branch
        %153 = sbr.rel (%p150) target = $region12
      $region11: #{tpu_custom_call.1} parent=5 // pred_region
        %s154 = ssub.s32 %s18, 1
      $region12: #{tpu_custom_call.1} parent=5 // pred_fallthru
        _
      %p155 = scmp.lt.s32.totalorder %s18, 2
      // Predicated region
      $region13: #{tpu_custom_call.1} parent=5 // pred_check
        %p156 = pneg %p155
      $region14: #{tpu_custom_call.1} parent=5 // pred_check_branch
        %158 = sbr.rel (%p156) target = $region16
      $region15: #{tpu_custom_call.1} parent=5 // pred_region
        // Predicated region
        $region17: #{tpu_custom_call.1} parent=15 // pred_check
          %p159 = pneg %p52
        $region18: #{tpu_custom_call.1} parent=15 // pred_check_branch
          %161 = sbr.rel (%p159) target = $region20
        $region19: #{tpu_custom_call.1} parent=15 // pred_region
          %s162 = sand.u32 %s42, 1
          %s163 = scalar_lea.sflag [#allocation4], %s162
          %s164 = sand.u32 %s42, 1
          %s165 = smul.addr %s164, 16
          %s166 = scalar_lea.vmem [#allocation3], %s165
          %s168 = ssub.s32 256, 256
          %169 = vsyncadd %s163, %s168
          %s170 = smul.addr %s25, 2
          %s171 = sadd.s32 %s26, %s170
          %s172 = smul.addr %s171, 128
          %s173 = scalar_lea.hbm %s0, %s172
          %s174 = sshll.u32 %s166, 4
          %s175 = int_to_ptr.vmem [resolvable:$true] %s174
          %180 = dma.hbm_to_vmem [thread:$0]  %s173, 256, %s175, %s163, 128, 128, 8
        $region20: #{tpu_custom_call.1} parent=15 // pred_fallthru
          _
        // Predicated region
        $region21: #{tpu_custom_call.1} parent=15 // pred_check
          %p181 = pneg %p80
        $region22: #{tpu_custom_call.1} parent=15 // pred_check_branch
          %183 = sbr.rel (%p181) target = $region24
        $region23: #{tpu_custom_call.1} parent=15 // pred_region
          %s184 = sand.u32 %s18, 1
          %s185 = scalar_lea.sflag [#allocation7], %s184
          %s186 = sand.u32 %s70, 1
          %s187 = smul.addr %s186, 16
          %s188 = scalar_lea.vmem [#allocation6], %s187
          %s190 = ssub.s32 256, 256
          %191 = vsyncadd %s185, %s190
          %s192 = smul.addr %s25, 2
          %s193 = sadd.s32 %s26, %s192
          %s194 = smul.addr %s193, 128
          %s195 = scalar_lea.hbm %s1, %s194
          %s196 = sshll.u32 %s188, 4
          %s197 = int_to_ptr.vmem [resolvable:$true] %s196
          %202 = dma.hbm_to_vmem [thread:$0]  %s195, 256, %s197, %s185, 128, 128, 8
        $region24: #{tpu_custom_call.1} parent=15 // pred_fallthru
          _
        // Predicated region
        $region25: #{tpu_custom_call.1} parent=15 // pred_check
          %p203 = pneg %p108
        $region26: #{tpu_custom_call.1} parent=15 // pred_check_branch
          %205 = sbr.rel (%p203) target = $region28
        $region27: #{tpu_custom_call.1} parent=15 // pred_region
          %s206 = sand.u32 %s18, 1
          %s207 = scalar_lea.sflag [#allocation7], %s206
          %s208 = sand.u32 %s98, 1
          %s209 = smul.addr %s208, 16
          %s210 = scalar_lea.vmem [#allocation8], %s209
          %s212 = ssub.s32 256, 256
          %213 = vsyncadd %s207, %s212
          %s214 = smul.addr %s25, 2
          %s215 = sadd.s32 %s26, %s214
          %s216 = smul.addr %s215, 128
          %s217 = scalar_lea.hbm %s2, %s216
          %s218 = sshll.u32 %s210, 4
          %s219 = int_to_ptr.vmem [resolvable:$true] %s218
          %224 = dma.hbm_to_vmem [thread:$0]  %s217, 256, %s219, %s207, 128, 128, 8
        $region28: #{tpu_custom_call.1} parent=15 // pred_fallthru
          _
      $region16: #{tpu_custom_call.1} parent=5 // pred_fallthru
        _
      %p225 = scmp.le.s32.totalorder 1, %s18
      %p226 = scmp.lt.s32.totalorder %s18, 3
      %p227 = pnand %p225, %p226
      %p228 = pneg %p227
      // Predicated region
      $region29: #{tpu_custom_call.1} parent=5 // pred_check
        _
      $region30: #{tpu_custom_call.1} parent=5 // pred_check_branch
        %230 = sbr.rel (%p227) target = $region32
      $region31: #{tpu_custom_call.1} parent=5 // pred_region
        %s231 = ssub.s32 %s18, 1
        %s232 = sand.u32 %s45, 1
        %s233 = scalar_lea.sflag [#allocation4], %s232
        %s234 = sand.u32 %s45, 1
        %s235 = smul.addr %s234, 16
        %s236 = scalar_lea.vmem [#allocation3], %s235
        // Predicated region
        $region33: #{tpu_custom_call.1} parent=31 // pred_check
          %p237 = pneg %p58
        $region34: #{tpu_custom_call.1} parent=31 // pred_check_branch
          %239 = sbr.rel (%p237) target = $region36
        $region35: #{tpu_custom_call.1} parent=31 // pred_region
          %240 = dma.done %s233, 256
        $region36: #{tpu_custom_call.1} parent=31 // pred_fallthru
          _
        %s241 = sand.u32 %s23, 1
        %s242 = scalar_lea.sflag [#allocation7], %s241
        %s243 = sand.u32 %s73, 1
        %s244 = smul.addr %s243, 16
        %s245 = scalar_lea.vmem [#allocation6], %s244
        // Predicated region
        $region37: #{tpu_custom_call.1} parent=31 // pred_check
          %p246 = pneg %p86
        $region38: #{tpu_custom_call.1} parent=31 // pred_check_branch
          %248 = sbr.rel (%p246) target = $region40
        $region39: #{tpu_custom_call.1} parent=31 // pred_region
          %249 = dma.done %s242, 256
        $region40: #{tpu_custom_call.1} parent=31 // pred_fallthru
          _
        %s250 = sand.u32 %s23, 1
        %s251 = scalar_lea.sflag [#allocation7], %s250
        %s252 = sand.u32 %s101, 1
        %s253 = smul.addr %s252, 16
        %s254 = scalar_lea.vmem [#allocation8], %s253
        // Predicated region
        $region41: #{tpu_custom_call.1} parent=31 // pred_check
          %p255 = pneg %p114
        $region42: #{tpu_custom_call.1} parent=31 // pred_check_branch
          %257 = sbr.rel (%p255) target = $region44
        $region43: #{tpu_custom_call.1} parent=31 // pred_region
          %258 = dma.done %s251, 256
        $region44: #{tpu_custom_call.1} parent=31 // pred_fallthru
          _
        %s259 = sand.u32 %s45, 1
        %s260 = scalar_lea.sflag [#allocation4], %s259
        %s261 = sand.u32 %s45, 1
        %s262 = smul.addr %s261, 16
        %s263 = scalar_lea.vmem [#allocation3], %s262
        %p264 = pneg %p58
        %p265 = pneg %p55
        %s266 = sand.u32 %s23, 1
        %s267 = scalar_lea.sflag [#allocation7], %s266
        %s268 = sand.u32 %s73, 1
        %s269 = smul.addr %s268, 16
        %s270 = scalar_lea.vmem [#allocation6], %s269
        %p271 = pneg %p86
        %p272 = pneg %p83
        %s273 = sand.u32 %s23, 1
        %s274 = scalar_lea.sflag [#allocation7], %s273
        %s275 = sand.u32 %s101, 1
        %s276 = smul.addr %s275, 16
        %s277 = scalar_lea.vmem [#allocation8], %s276
        %p278 = pneg %p114
        %p279 = pneg %p111
        %p280 = pneg %p140
        %p281 = pneg %p137
        %s282 = sand.u32 %s127, 1
        %s283 = scalar_lea.sflag [#allocation5], %s282
        %s284 = sand.u32 %s127, 1
        %s285 = smul.addr %s284, 8
        %s286 = scalar_lea.vmem [#allocation9], %s285
        %p287 = scmp.eq.s32.totalorder %s28, 0
        // Predicated region
        $region45: #{tpu_custom_call.1} parent=31 // pred_check
          %p288 = pneg %p287
        $region46: #{tpu_custom_call.1} parent=31 // pred_check_branch
          %290 = sbr.rel (%p288) target = $region48
        $region47: #{tpu_custom_call.1} parent=31 // pred_region
          %291 = vst [vmem:[#allocation2] sm:$0xff] 0.0
          %292 = vst [vmem:[#allocation2 + $0x8] sm:$0xff] 0.0
        $region48: #{tpu_custom_call.1} parent=31 // pred_fallthru
          _
        %v293 = vld [vmem:[%s236] sm:$0xff]
        %v294 = vld [vmem:[%s236 + $0x8] sm:$0xff]
        %v295 = vld [vmem:[%s245] sm:$0xff]
        %v296 = vld [vmem:[%s245 + $0x8] sm:$0xff]
        %v297 = vsub.f32 %v293, %v295
        %v298 = vsub.f32 %v294, %v296
        %v299 = vld [vmem:[%s254] sm:$0xff]
        %v300 = vld [vmem:[%s254 + $0x8] sm:$0xff]
        %v301 = vmul.f32 %v297, %v299
        %v302 = vmul.f32 %v298, %v300
        %v303 = vmul.f32 %v301, %v301
        %v304 = vmul.f32 %v302, %v302
        %v305 = vld [vmem:[#allocation2] sm:$0xff]
        %v306 = vld [vmem:[#allocation2 + $0x8] sm:$0xff]
        %v307 = vadd.f32 %v305, %v303
        %v308 = vadd.f32 %v306, %v304
        %309 = vst [vmem:[#allocation2] sm:$0xff] %v307
        %310 = vst [vmem:[#allocation2 + $0x8] sm:$0xff] %v308
        // Predicated region
        $region49: #{tpu_custom_call.1} parent=31 // pred_check
          %p311 = pneg %p287
        $region50: #{tpu_custom_call.1} parent=31 // pred_check_branch
          %313 = sbr.rel (%p311) target = $region52
        $region51: #{tpu_custom_call.1} parent=31 // pred_region
          %v314 = vld [vmem:[#allocation2] sm:$0xff]
          %v315 = vld [vmem:[#allocation2 + $0x8] sm:$0xff]
          %v316 = vadd.f32 %v314, %v315
          %317 = vadd.xlane.f32.xlu0 %v316
          %v318 = vpop.xlane.xlu0 %317
          %v319 = vrot.slane %v318, 4
          %v320 = vadd.f32 %v318, %v319
          %v321 = vrot.slane %v320, 2
          %v322 = vadd.f32 %v320, %v321
          %v323 = vrot.slane %v322, 1
          %v324 = vadd.f32 %v322, %v323
          %s325 = vtos %v324
          %v326 = vstv %s325
          %327 = vst [vmem:[%s286] sm:$0xff] %v326
        $region52: #{tpu_custom_call.1} parent=31 // pred_fallthru
          _
        %s328 = sand.u32 %s127, 1
        %s329 = scalar_lea.sflag [#allocation5], %s328
        %s330 = sand.u32 %s127, 1
        %s331 = smul.addr %s330, 8
        %s332 = scalar_lea.vmem [#allocation9], %s331
        // Predicated region
        $region53: #{tpu_custom_call.1} parent=31 // pred_check
          %p333 = pneg %p137
        $region54: #{tpu_custom_call.1} parent=31 // pred_check_branch
          %335 = sbr.rel (%p333) target = $region56
        $region55: #{tpu_custom_call.1} parent=31 // pred_region
          %s337 = ssub.s32 128, 128
          %338 = vsyncadd %s329, %s337
          %s339 = smul.addr %s27, 128
          %s340 = scalar_lea.hbm %s3, %s339
          %s342 = sshll.u32 %s332, 4
          %s343 = int_to_ptr.vmem [resolvable:$true] %s342
          %345 = dma.vmem_to_hbm [thread:$0]  %s343, 128, %s340, %s329
        $region56: #{tpu_custom_call.1} parent=31 // pred_fallthru
          _
      $region32: #{tpu_custom_call.1} parent=5 // pred_fallthru
        _
      %p346 = scmp.le.s32.totalorder 2, %s18
      // Predicated region
      $region57: #{tpu_custom_call.1} parent=5 // pred_check
        %p347 = pneg %p346
      $region58: #{tpu_custom_call.1} parent=5 // pred_check_branch
        %349 = sbr.rel (%p347) target = $region60
      $region59: #{tpu_custom_call.1} parent=5 // pred_region
        %s350 = ssub.s32 %s18, 2
        // Predicated region
        $region61: #{tpu_custom_call.1} parent=59 // pred_check
          %p351 = pneg %p143
        $region62: #{tpu_custom_call.1} parent=59 // pred_check_branch
          %353 = sbr.rel (%p351) target = $region64
        $region63: #{tpu_custom_call.1} parent=59 // pred_region
          %s354 = sand.u32 %s128, 1
          %s355 = scalar_lea.sflag [#allocation5], %s354
          %s356 = sand.u32 %s128, 1
          %s357 = smul.addr %s356, 8
          %s358 = scalar_lea.vmem [#allocation9], %s357
          %359 = dma.done %s355, 128
        $region64: #{tpu_custom_call.1} parent=59 // pred_fallthru
          _
      $region60: #{tpu_custom_call.1} parent=5 // pred_fallthru
        _
    $region6: #{tpu_custom_call.1} parent=1 // loop_footer
      %s22 = sadd.s32 1, %s18
    $region7: #{tpu_custom_call.1} parent=1 // loop_footer_branch
      %17 = sbr.rel target = $region3
    $region8: #{tpu_custom_call.1} parent=1 // loop_exit
      _
    %360 = vsyncpa [#allocation4], 1
    %s361 = scalar_lea.sflag [#allocation4], 1
    %362 = vsyncpa %s361, 1
    %363 = vsyncpa [#allocation7], 1
    %s364 = scalar_lea.sflag [#allocation7], 1
    %365 = vsyncpa %s364, 1
    %366 = vsyncpa [#allocation5], 1
    %s367 = scalar_lea.sflag [#allocation5], 1
    %368 = vsyncpa %s367, 1

</llo_original>
